<compile_context>
chip_gen: v5e
topology: v5e:2x2
jax: 0.10.0
libtpu: 0.0.40
codegen_flags: <defaults>
</compile_context>

<pallas_src>
import jax
import jax.numpy as jnp
from jax.experimental import pallas as pl
from jax.experimental.pallas import tpu as pltpu


def _critic_kernel(x_ref, a_ref, w1x_ref, w1a_ref, b1_ref,
                   w2_ref, b2_ref, w3_ref, b3_ref, w4_ref, b4_ref, out_ref):
    # Layer 1: two small-K f32 MXU passes; concat + 1/max_action fold are
    # already expressed as (W1x, W1a/max_action) at param-prep time.
    h = jnp.dot(x_ref[...].astype(jnp.float32), w1x_ref[...],
                preferred_element_type=jnp.float32)
    h = h + jnp.dot(a_ref[...].astype(jnp.float32), w1a_ref[...],
                    preferred_element_type=jnp.float32)
    h = jnp.maximum(h + b1_ref[...], 0.0)

    # Layers 2/3: bf16 or f32 MXU operands, f32 accumulate, f32 bias/ReLU.
    cdt = w2_ref.dtype
    h = jnp.dot(h.astype(cdt), w2_ref[...], preferred_element_type=jnp.float32)
    h = jnp.maximum(h + b2_ref[...], 0.0)

    h = jnp.dot(h.astype(cdt), w3_ref[...], preferred_element_type=jnp.float32)
    h = jnp.maximum(h + b3_ref[...], 0.0)

    # Output head 256 -> 1: VPU multiply + lane reduction (avoids an N=1 MXU
    # pass that would pad N to a full MXU tile).
    q = jnp.sum(h * w4_ref[...], axis=-1, keepdims=True) + b4_ref[...]
    out_ref[...] = q.astype(out_ref.dtype)


def _round_up(n, m):
    return ((n + m - 1) // m) * m


def _pick_block_b(B, cap=2048):
    """Batch tile: multiple of 8, capped for VMEM, >=2 grid steps when B > 64.

    cap=2048 keeps live f32 intermediates (~3 x 2 MiB) + double-buffered input
    tiles + ~1 MiB of resident weights comfortably inside v7x's 64 MiB VMEM
    and v5e's 16 MiB default scoped limit; >=2 steps lets the "parallel" grid
    axis split across v7x's two TensorCores.
    """
    if B <= 64:
        return _round_up(B, 8)
    return min(cap, _round_up(pl.cdiv(B, 2), 8))


def critic_forward(x, actions, packed, *, block_b=None):
    """x: (B, obs+goal) f32, actions: (B, action) f32 -> q: (B, 1) f32.

    `packed` comes from prepare_params() (1/max_action folded into W1a,
    w4 stored as a lane-dense row).
    """
    B = x.shape[0]
    cdt = packed["w2"].dtype  # streamed / layers-2-3 MXU operand dtype

    if block_b is None:
        block_b = _pick_block_b(B)
    assert block_b % 8 == 0, "block_b must be a multiple of 8 (sublane)"

    grid = pl.cdiv(B, block_b)
    b_pad = grid * block_b

    # Cast the only per-step streamed operands to the compute dtype in the
    # wrapper (halves DMA bytes on the bf16 path); pad the batch with zero
    # rows up to the grid extent (sliced off below).
    xs = x.astype(cdt)
    acts = actions.astype(cdt)
    if b_pad != B:
        xs = jnp.pad(xs, ((0, b_pad - B), (0, 0)))
        acts = jnp.pad(acts, ((0, b_pad - B), (0, 0)))

    d_x = xs.shape[1]
    d_a = acts.shape[1]

    def resident(arr):  # weights/biases: constant index_map, stay in VMEM
        return pl.BlockSpec(arr.shape, lambda i: (0, 0))

    grid_spec = pltpu.PrefetchScalarGridSpec(
        num_scalar_prefetch=0,
        grid=(grid,),
        in_specs=[
            pl.BlockSpec((block_b, d_x), lambda i: (i, 0)),   # x tile
            pl.BlockSpec((block_b, d_a), lambda i: (i, 0)),   # actions tile
            resident(packed["w1x"]), resident(packed["w1a"]), resident(packed["b1"]),
            resident(packed["w2"]), resident(packed["b2"]),
            resident(packed["w3"]), resident(packed["b3"]),
            resident(packed["w4_row"]), resident(packed["b4"]),
        ],
        out_specs=pl.BlockSpec((block_b, 1), lambda i: (i, 0)),
    )

    q = pl.pallas_call(
        _critic_kernel,
        out_shape=jax.ShapeDtypeStruct((b_pad, 1), jnp.float32),
        grid_spec=grid_spec,
        compiler_params=pltpu.CompilerParams(
            dimension_semantics=("parallel",)),
    )(xs, acts,
      packed["w1x"], packed["w1a"], packed["b1"],
      packed["w2"], packed["b2"],
      packed["w3"], packed["b3"],
      packed["w4_row"], packed["b4"])

    return q[:B] if b_pad != B else q


def prepare_params(raw, max_action, *, compute_dtype=jnp.float32):
    """Fold 1/max_action into W1a, keep layer-1 weights f32, transpose w4."""
    return {
        "w1x": raw["w1x"].astype(jnp.float32),                        # (obs+goal, 256)
        "w1a": (raw["w1a"] * (1.0 / max_action)).astype(jnp.float32), # (action, 256)
        "b1": raw["b1"].astype(jnp.float32),
        "w2": raw["w2"].astype(compute_dtype),
        "b2": raw["b2"].astype(jnp.float32),
        "w3": raw["w3"].astype(compute_dtype),
        "b3": raw["b3"].astype(jnp.float32),
        "w4_row": raw["w4"].T.astype(jnp.float32),  # (1, 256) lane-dense row
        "b4": raw["b4"].astype(jnp.float32),        # (1, 1)
    }


def init_params(key, obs, goal, action, hidden=256):
    """Deterministic init matching nn.Linear's U(-1/sqrt(fan_in), 1/sqrt(fan_in))."""
    d_in = obs + goal + action

    def linear(k, fan_in, fan_out):
        kw, kb = jax.random.split(k)
        bound = 1.0 / jnp.sqrt(fan_in)
        w = jax.random.uniform(kw, (fan_in, fan_out), jnp.float32, -bound, bound)
        b = jax.random.uniform(kb, (1, fan_out), jnp.float32, -bound, bound)
        return w, b

    k1, k2, k3, k4 = jax.random.split(key, 4)
    w1, b1 = linear(k1, d_in, hidden)     # fc1, stored as (in, out)
    w2, b2 = linear(k2, hidden, hidden)   # fc2
    w3, b3 = linear(k3, hidden, hidden)   # fc3
    w4, b4 = linear(k4, hidden, 1)        # q_out
    return {
        "w1x": w1[: obs + goal, :],  # rows multiplying the [obs, goal] part
        "w1a": w1[obs + goal:, :],   # rows multiplying the action part
        "b1": b1,
        "w2": w2, "b2": b2,
        "w3": w3, "b3": b3,
        "w4": w4, "b4": b4,
    }


def _reference(x, actions, raw, max_action):
    xa = jnp.concatenate([x, actions / max_action], axis=1)
    w1 = jnp.concatenate([raw["w1x"], raw["w1a"]], axis=0)
    h = jax.nn.relu(xa @ w1 + raw["b1"])
    h = jax.nn.relu(h @ raw["w2"] + raw["b2"])
    h = jax.nn.relu(h @ raw["w3"] + raw["b3"])
    return h @ raw["w4"] + raw["b4"]


if __name__ == "__main__":
    # Small env_params: obs=10, goal=5, action=4, action_max=1.5
    obs, goal, action = 10, 5, 4
    max_action = 1.5
    B = 8

    key = jax.random.PRNGKey(0)
    kx, ka, kp = jax.random.split(key, 3)
    x = jax.random.normal(kx, (B, obs + goal), jnp.float32)
    actions = jax.random.uniform(ka, (B, action), jnp.float32,
                                 -max_action, max_action)
    raw = init_params(kp, obs, goal, action)
    q_ref = _reference(x, actions, raw, max_action)

    # f32 path (checked against the pure-JAX reference).
    packed_f32 = prepare_params(raw, max_action, compute_dtype=jnp.float32)
    q = jax.block_until_ready(critic_forward(x, actions, packed_f32))
    assert q.shape == (B, 1)
    assert jnp.allclose(q, q_ref, atol=1e-3, rtol=1e-3), \
        float(jnp.max(jnp.abs(q - q_ref)))

    # bf16 operands / f32 accumulate — the fast MXU path on v6e/v7x.
    packed_bf16 = prepare_params(raw, max_action, compute_dtype=jnp.bfloat16)
    q_bf16 = jax.block_until_ready(critic_forward(x, actions, packed_bf16))
    assert q_bf16.shape == (B, 1)
    assert jnp.max(jnp.abs(q_bf16 - q_ref)) < 0.1 * (1.0 + jnp.max(jnp.abs(q_ref)))

    # Ragged batch: exercises batch padding, output slicing, and a 2-step grid.
    B2 = 1000
    k2x, k2a = jax.random.split(jax.random.PRNGKey(1))
    x2 = jax.random.normal(k2x, (B2, obs + goal), jnp.float32)
    a2 = jax.random.uniform(k2a, (B2, action), jnp.float32,
                            -max_action, max_action)
    q2 = jax.block_until_ready(critic_forward(x2, a2, packed_f32))
    q2_ref = _reference(x2, a2, raw, max_action)
    assert q2.shape == (B2, 1)
    assert jnp.allclose(q2, q2_ref, atol=1e-3, rtol=1e-3)

    # Larger batch hitting the 2048-row tile cap: grid = 4 parallel steps
    # (software pipelining + megacore split on v7x).
    B3 = 8192
    k3x, k3a = jax.random.split(jax.random.PRNGKey(2))
    x3 = jax.random.normal(k3x, (B3, obs + goal), jnp.float32)
    a3 = jax.random.uniform(k3a, (B3, action), jnp.float32,
                            -max_action, max_action)
    q3 = jax.block_until_ready(critic_forward(x3, a3, packed_f32))
    q3_ref = _reference(x3, a3, raw, max_action)
    assert q3.shape == (B3, 1)
    assert jnp.allclose(q3, q3_ref, atol=1e-3, rtol=1e-3)

    print("KERNEL_OK")
</pallas_src>

<mosaic_0001>
module attributes {stable_mosaic.version = 11 : i64} {
  func.func @_critic_kernel(%arg0: i32, %arg1: memref<8x15xf32, #tpu.memory_space<vmem>>, %arg2: memref<8x4xf32, #tpu.memory_space<vmem>>, %arg3: memref<15x256xf32, #tpu.memory_space<vmem>>, %arg4: memref<4x256xf32, #tpu.memory_space<vmem>>, %arg5: memref<1x256xf32, #tpu.memory_space<vmem>>, %arg6: memref<256x256xf32, #tpu.memory_space<vmem>>, %arg7: memref<1x256xf32, #tpu.memory_space<vmem>>, %arg8: memref<256x256xf32, #tpu.memory_space<vmem>>, %arg9: memref<1x256xf32, #tpu.memory_space<vmem>>, %arg10: memref<1x256xf32, #tpu.memory_space<vmem>>, %arg11: memref<1x1xf32, #tpu.memory_space<vmem>>, %arg12: memref<8x1xf32, #tpu.memory_space<vmem>>) attributes {dimension_semantics = [#tpu.dimension_semantics<parallel>], iteration_bounds = array<i64: 1>, scalar_prefetch = 0 : i64, scratch_operands = 0 : i64, tpu.core_type = #tpu.core_type<tc>, window_params = [{transform_indices = @transform_0, window_bounds = array<i64: 8, 15>}, {transform_indices = @transform_1, window_bounds = array<i64: 8, 4>}, {pipeline_mode = #tpu.pipeline_mode<synchronous>, transform_indices = @transform_2, window_bounds = array<i64: 15, 256>}, {pipeline_mode = #tpu.pipeline_mode<synchronous>, transform_indices = @transform_3, window_bounds = array<i64: 4, 256>}, {pipeline_mode = #tpu.pipeline_mode<synchronous>, transform_indices = @transform_4, window_bounds = array<i64: 1, 256>}, {pipeline_mode = #tpu.pipeline_mode<synchronous>, transform_indices = @transform_5, window_bounds = array<i64: 256, 256>}, {pipeline_mode = #tpu.pipeline_mode<synchronous>, transform_indices = @transform_6, window_bounds = array<i64: 1, 256>}, {pipeline_mode = #tpu.pipeline_mode<synchronous>, transform_indices = @transform_7, window_bounds = array<i64: 256, 256>}, {pipeline_mode = #tpu.pipeline_mode<synchronous>, transform_indices = @transform_8, window_bounds = array<i64: 1, 256>}, {pipeline_mode = #tpu.pipeline_mode<synchronous>, transform_indices = @transform_9, window_bounds = array<i64: 1, 256>}, {pipeline_mode = #tpu.pipeline_mode<synchronous>, transform_indices = @transform_10, window_bounds = array<i64: 1, 1>}, {transform_indices = @transform_11, window_bounds = array<i64: 8, 1>}]} {
    %c0 = arith.constant 0 : index
    %c0_0 = arith.constant 0 : index
    %0 = vector.load %arg1[%c0, %c0_0] : memref<8x15xf32, #tpu.memory_space<vmem>>, vector<8x15xf32>
    %c0_1 = arith.constant 0 : index
    %c0_2 = arith.constant 0 : index
    %1 = vector.load %arg3[%c0_1, %c0_2] : memref<15x256xf32, #tpu.memory_space<vmem>>, vector<15x256xf32>
    %cst = arith.constant dense<0.000000e+00> : vector<8x256xf32>
    %2 = tpu.matmul %0, %1, %cst {dimension_numbers = #tpu.dot_dimension_numbers<[1], [0], [0], [1], [0, 0, 1, 1], [], []>} : vector<8x15xf32>, vector<15x256xf32>, vector<8x256xf32> -> vector<8x256xf32>
    %c0_3 = arith.constant 0 : index
    %c0_4 = arith.constant 0 : index
    %3 = vector.load %arg2[%c0_3, %c0_4] : memref<8x4xf32, #tpu.memory_space<vmem>>, vector<8x4xf32>
    %c0_5 = arith.constant 0 : index
    %c0_6 = arith.constant 0 : index
    %4 = vector.load %arg4[%c0_5, %c0_6] : memref<4x256xf32, #tpu.memory_space<vmem>>, vector<4x256xf32>
    %cst_7 = arith.constant dense<0.000000e+00> : vector<8x256xf32>
    %5 = tpu.matmul %3, %4, %cst_7 {dimension_numbers = #tpu.dot_dimension_numbers<[1], [0], [0], [1], [0, 0, 1, 1], [], []>} : vector<8x4xf32>, vector<4x256xf32>, vector<8x256xf32> -> vector<8x256xf32>
    %6 = arith.addf %2, %5 : vector<8x256xf32>
    %c0_8 = arith.constant 0 : index
    %c0_9 = arith.constant 0 : index
    %7 = vector.load %arg5[%c0_8, %c0_9] : memref<1x256xf32, #tpu.memory_space<vmem>>, vector<1x256xf32>
    %8 = vector.broadcast %7 : vector<1x256xf32> to vector<8x256xf32>
    %9 = arith.addf %6, %8 : vector<8x256xf32>
    %cst_10 = arith.constant 0.000000e+00 : f32
    %10 = vector.broadcast %cst_10 : f32 to vector<8x256xf32>
    %11 = arith.maximumf %9, %10 : vector<8x256xf32>
    %c0_11 = arith.constant 0 : index
    %c0_12 = arith.constant 0 : index
    %12 = vector.load %arg6[%c0_11, %c0_12] : memref<256x256xf32, #tpu.memory_space<vmem>>, vector<256x256xf32>
    %cst_13 = arith.constant dense<0.000000e+00> : vector<8x256xf32>
    %13 = tpu.matmul %11, %12, %cst_13 {dimension_numbers = #tpu.dot_dimension_numbers<[1], [0], [0], [1], [0, 0, 1, 1], [], []>} : vector<8x256xf32>, vector<256x256xf32>, vector<8x256xf32> -> vector<8x256xf32>
    %c0_14 = arith.constant 0 : index
    %c0_15 = arith.constant 0 : index
    %14 = vector.load %arg7[%c0_14, %c0_15] : memref<1x256xf32, #tpu.memory_space<vmem>>, vector<1x256xf32>
    %15 = vector.broadcast %14 : vector<1x256xf32> to vector<8x256xf32>
    %16 = arith.addf %13, %15 : vector<8x256xf32>
    %cst_16 = arith.constant 0.000000e+00 : f32
    %17 = vector.broadcast %cst_16 : f32 to vector<8x256xf32>
    %18 = arith.maximumf %16, %17 : vector<8x256xf32>
    %c0_17 = arith.constant 0 : index
    %c0_18 = arith.constant 0 : index
    %19 = vector.load %arg8[%c0_17, %c0_18] : memref<256x256xf32, #tpu.memory_space<vmem>>, vector<256x256xf32>
    %cst_19 = arith.constant dense<0.000000e+00> : vector<8x256xf32>
    %20 = tpu.matmul %18, %19, %cst_19 {dimension_numbers = #tpu.dot_dimension_numbers<[1], [0], [0], [1], [0, 0, 1, 1], [], []>} : vector<8x256xf32>, vector<256x256xf32>, vector<8x256xf32> -> vector<8x256xf32>
    %c0_20 = arith.constant 0 : index
    %c0_21 = arith.constant 0 : index
    %21 = vector.load %arg9[%c0_20, %c0_21] : memref<1x256xf32, #tpu.memory_space<vmem>>, vector<1x256xf32>
    %22 = vector.broadcast %21 : vector<1x256xf32> to vector<8x256xf32>
    %23 = arith.addf %20, %22 : vector<8x256xf32>
    %cst_22 = arith.constant 0.000000e+00 : f32
    %24 = vector.broadcast %cst_22 : f32 to vector<8x256xf32>
    %25 = arith.maximumf %23, %24 : vector<8x256xf32>
    %c0_23 = arith.constant 0 : index
    %c0_24 = arith.constant 0 : index
    %26 = vector.load %arg10[%c0_23, %c0_24] : memref<1x256xf32, #tpu.memory_space<vmem>>, vector<1x256xf32>
    %27 = vector.broadcast %26 : vector<1x256xf32> to vector<8x256xf32>
    %28 = arith.mulf %25, %27 : vector<8x256xf32>
    %cst_25 = arith.constant dense<0.000000e+00> : vector<8xf32>
    %29 = vector.multi_reduction <add>, %28, %cst_25 [1] : vector<8x256xf32> to vector<8xf32>
    %30 = vector.shape_cast %29 : vector<8xf32> to vector<8x1xf32>
    %c0_26 = arith.constant 0 : index
    %c0_27 = arith.constant 0 : index
    %31 = vector.load %arg11[%c0_26, %c0_27] : memref<1x1xf32, #tpu.memory_space<vmem>>, vector<1x1xf32>
    %32 = vector.broadcast %31 : vector<1x1xf32> to vector<8x1xf32>
    %33 = arith.addf %30, %32 : vector<8x1xf32>
    %c0_28 = arith.constant 0 : index
    %c0_29 = arith.constant 0 : index
    %34 = vector.load %arg12[%c0_28, %c0_29] : memref<8x1xf32, #tpu.memory_space<vmem>>, vector<8x1xf32>
    tpu.vector_store %arg12[%c0_28, %c0_29], %33 {strides = array<i32>} : memref<8x1xf32, #tpu.memory_space<vmem>>, vector<8x1xf32>,
    return
  }
  func.func @transform_0(%arg0: i32) -> (i32, i32) {
    %c0_i32 = arith.constant 0 : i32
    %c0_i32_0 = arith.constant 0 : i32
    return %arg0, %c0_i32 : i32, i32
  }
  func.func @transform_1(%arg0: i32) -> (i32, i32) {
    %c0_i32 = arith.constant 0 : i32
    %c0_i32_0 = arith.constant 0 : i32
    return %arg0, %c0_i32 : i32, i32
  }
  func.func @transform_2(%arg0: i32) -> (i32, i32) {
    %c0_i32 = arith.constant 0 : i32
    %c0_i32_0 = arith.constant 0 : i32
    %c0_i32_1 = arith.constant 0 : i32
    return %c0_i32, %c0_i32_0 : i32, i32
  }
  func.func @transform_3(%arg0: i32) -> (i32, i32) {
    %c0_i32 = arith.constant 0 : i32
    %c0_i32_0 = arith.constant 0 : i32
    %c0_i32_1 = arith.constant 0 : i32
    return %c0_i32, %c0_i32_0 : i32, i32
  }
  func.func @transform_4(%arg0: i32) -> (i32, i32) {
    %c0_i32 = arith.constant 0 : i32
    %c0_i32_0 = arith.constant 0 : i32
    %c0_i32_1 = arith.constant 0 : i32
    return %c0_i32, %c0_i32_0 : i32, i32
  }
  func.func @transform_5(%arg0: i32) -> (i32, i32) {
    %c0_i32 = arith.constant 0 : i32
    %c0_i32_0 = arith.constant 0 : i32
    %c0_i32_1 = arith.constant 0 : i32
    return %c0_i32, %c0_i32_0 : i32, i32
  }
  func.func @transform_6(%arg0: i32) -> (i32, i32) {
    %c0_i32 = arith.constant 0 : i32
    %c0_i32_0 = arith.constant 0 : i32
    %c0_i32_1 = arith.constant 0 : i32
    return %c0_i32, %c0_i32_0 : i32, i32
  }
  func.func @transform_7(%arg0: i32) -> (i32, i32) {
    %c0_i32 = arith.constant 0 : i32
    %c0_i32_0 = arith.constant 0 : i32
    %c0_i32_1 = arith.constant 0 : i32
    return %c0_i32, %c0_i32_0 : i32, i32
  }
  func.func @transform_8(%arg0: i32) -> (i32, i32) {
    %c0_i32 = arith.constant 0 : i32
    %c0_i32_0 = arith.constant 0 : i32
    %c0_i32_1 = arith.constant 0 : i32
    return %c0_i32, %c0_i32_0 : i32, i32
  }
  func.func @transform_9(%arg0: i32) -> (i32, i32) {
    %c0_i32 = arith.constant 0 : i32
    %c0_i32_0 = arith.constant 0 : i32
    %c0_i32_1 = arith.constant 0 : i32
    return %c0_i32, %c0_i32_0 : i32, i32
  }
  func.func @transform_10(%arg0: i32) -> (i32, i32) {
    %c0_i32 = arith.constant 0 : i32
    %c0_i32_0 = arith.constant 0 : i32
    %c0_i32_1 = arith.constant 0 : i32
    return %c0_i32, %c0_i32_0 : i32, i32
  }
  func.func @transform_11(%arg0: i32) -> (i32, i32) {
    %c0_i32 = arith.constant 0 : i32
    %c0_i32_0 = arith.constant 0 : i32
    return %arg0, %c0_i32 : i32, i32
  }
}

</mosaic_0001>

<llo_original>
// kernel: tpu_custom_call.1
$region0: #{tpu_custom_call.1}
  #allocation0 [shape = 'u32[]', space=smem, size = 0x4, offset = 0x4, fixed_abs, tag = 'smem constant byte address 0x4 - core index']
  #allocation1 [shape = 'u32[72,128]{1,0:T(1,128)}', space=vmem, size = 0x9000, scoped, tag = 'internal scratch']
  #allocation2 [shape = 'f32[1,1]{1,0:T(1,128)S(1)}', space=vmem, size = 0x200, scoped, tag = 'scoped memory for tpu_custom_call.1']
  %s0 = inlined_call_operand.vmem [shape: f32[8,15], index: 0, kind: input, shape index: {}]
  %s1 = inlined_call_operand.vmem [shape: f32[8,4], index: 1, kind: input, shape index: {}]
  %s2 = inlined_call_operand.hbm [shape: f32[15,256], index: 2, kind: input, shape index: {}]
  %s3 = inlined_call_operand.vmem [shape: f32[4,256], index: 3, kind: input, shape index: {}]
  %s4 = inlined_call_operand.hbm [shape: f32[1,256], index: 4, kind: input, shape index: {}]
  %s5 = inlined_call_operand.hbm [shape: f32[256,256], index: 5, kind: input, shape index: {}]
  %s6 = inlined_call_operand.vmem [shape: f32[1,256], index: 6, kind: input, shape index: {}]
  %s7 = inlined_call_operand.hbm [shape: f32[256,256], index: 7, kind: input, shape index: {}]
  %s8 = inlined_call_operand.vmem [shape: f32[1,256], index: 8, kind: input, shape index: {}]
  %s9 = inlined_call_operand.vmem [shape: f32[1,256], index: 9, kind: input, shape index: {}]
  %s10 = inlined_call_operand.<no memory space> [shape: f32[1,1], index: 10, kind: input, shape index: {}]
  %s11 = inlined_call_operand.vmem [shape: f32[8,1], index: 11, kind: output, shape index: {}]
  %s12 = sld [smem:[#allocation0]]
  $region70: #{tpu_custom_call.1} parent=0
    _
  %s14 = ssub.s32 1, %s12
  %s15 = scalar_select 0, %s14, %s12
  %v16 = vstv %s10
  %17 = vst [vmem:[#allocation2] sm:$0x1] %v16
  $region1: #{tpu_custom_call.1} parent=0
    #allocation3 [shape = 'u8[16384]{0}', space=vmem, size = 0x4000, scoped, tag = 'input window, operand 2, single buffered']
    #allocation4 [shape = 's32[1]{0}', space=sflag, size = 0x4, scoped, tag = 'scoped memory for tpu_custom_call.1']
    #allocation5 [shape = 'u8[1024]{0}', space=vmem, size = 0x400, scoped, tag = 'input window, operand 4, single buffered']
    #allocation6 [shape = 's32[1]{0}', space=sflag, size = 0x4, scoped, tag = 'scoped memory for tpu_custom_call.1']
    #allocation7 [shape = 'u8[262144]{0}', space=vmem, size = 0x40000, scoped, tag = 'input window, operand 5, single buffered']
    #allocation8 [shape = 'u8[262144]{0}', space=vmem, size = 0x40000, scoped, tag = 'input window, operand 7, single buffered']
    #allocation9 [shape = 's32[1]{0}', space=sflag, size = 0x4, scoped, tag = 'scoped memory for tpu_custom_call.1']
    %18 = vsyncpa [#allocation4], 0
    %19 = vsyncpa [#allocation6], 0
    %20 = vsyncpa [#allocation9], 0
    // Predicated region
    $region2: #{tpu_custom_call.1} parent=1 // pred_check
      _
    $region3: #{tpu_custom_call.1} parent=1 // pred_check_branch
      %22 = sbr.rel (0) target = $region5
    $region4: #{tpu_custom_call.1} parent=1 // pred_region
      _
    $region5: #{tpu_custom_call.1} parent=1 // pred_fallthru
      _
    // Predicated region
    $region6: #{tpu_custom_call.1} parent=1 // pred_check
      _
    $region7: #{tpu_custom_call.1} parent=1 // pred_check_branch
      %24 = sbr.rel (0) target = $region9
    $region8: #{tpu_custom_call.1} parent=1 // pred_region
      _
    $region9: #{tpu_custom_call.1} parent=1 // pred_fallthru
      _
    // Predicated region
    $region10: #{tpu_custom_call.1} parent=1 // pred_check
      _
    $region11: #{tpu_custom_call.1} parent=1 // pred_check_branch
      %26 = sbr.rel (0) target = $region13
    $region12: #{tpu_custom_call.1} parent=1 // pred_region
      %28 = vsyncadd [#allocation4], 0
      %s29 = sshll.u32 %s2, 4
      %s30 = int_to_ptr.hbm [resolvable:$true] %s29
      %s31 = sshll.u32 [#allocation3], 4
      %s32 = int_to_ptr.vmem [resolvable:$true] %s31
      %37 = dma.hbm_to_vmem [thread:$0]  %s30, 512, %s32, [#allocation4], 256, 256, 16
    $region13: #{tpu_custom_call.1} parent=1 // pred_fallthru
      _
    // Predicated region
    $region14: #{tpu_custom_call.1} parent=1 // pred_check
      _
    $region15: #{tpu_custom_call.1} parent=1 // pred_check_branch
      %39 = sbr.rel (0) target = $region17
    $region16: #{tpu_custom_call.1} parent=1 // pred_region
      _
    $region17: #{tpu_custom_call.1} parent=1 // pred_fallthru
      _
    // Predicated region
    $region18: #{tpu_custom_call.1} parent=1 // pred_check
      _
    $region19: #{tpu_custom_call.1} parent=1 // pred_check_branch
      %41 = sbr.rel (0) target = $region21
    $region20: #{tpu_custom_call.1} parent=1 // pred_region
      %43 = vsyncadd [#allocation6], 0
      %s45 = sshll.u32 %s4, 4
      %s46 = int_to_ptr.hbm [resolvable:$true] %s45
      %s47 = sshll.u32 [#allocation5], 4
      %s48 = int_to_ptr.vmem [resolvable:$true] %s47
      %50 = dma.hbm_to_vmem [thread:$0]  %s46, 32, %s48, [#allocation6]
    $region21: #{tpu_custom_call.1} parent=1 // pred_fallthru
      _
    // Predicated region
    $region22: #{tpu_custom_call.1} parent=1 // pred_check
      _
    $region23: #{tpu_custom_call.1} parent=1 // pred_check_branch
      %52 = sbr.rel (0) target = $region25
    $region24: #{tpu_custom_call.1} parent=1 // pred_region
      %54 = vsyncadd [#allocation6], 0
      %s55 = sshll.u32 %s5, 4
      %s56 = int_to_ptr.hbm [resolvable:$true] %s55
      %s57 = sshll.u32 [#allocation7], 4
      %s58 = int_to_ptr.vmem [resolvable:$true] %s57
      %63 = dma.hbm_to_vmem [thread:$0]  %s56, 8192, %s58, [#allocation6], 256, 256, 16
    $region25: #{tpu_custom_call.1} parent=1 // pred_fallthru
      _
    // Predicated region
    $region26: #{tpu_custom_call.1} parent=1 // pred_check
      _
    $region27: #{tpu_custom_call.1} parent=1 // pred_check_branch
      %65 = sbr.rel (0) target = $region29
    $region28: #{tpu_custom_call.1} parent=1 // pred_region
      _
    $region29: #{tpu_custom_call.1} parent=1 // pred_fallthru
      _
    // Predicated region
    $region30: #{tpu_custom_call.1} parent=1 // pred_check
      _
    $region31: #{tpu_custom_call.1} parent=1 // pred_check_branch
      %67 = sbr.rel (0) target = $region33
    $region32: #{tpu_custom_call.1} parent=1 // pred_region
      %69 = vsyncadd [#allocation9], 0
      %s70 = sshll.u32 %s7, 4
      %s71 = int_to_ptr.hbm [resolvable:$true] %s70
      %s72 = sshll.u32 [#allocation8], 4
      %s73 = int_to_ptr.vmem [resolvable:$true] %s72
      %78 = dma.hbm_to_vmem [thread:$0]  %s71, 8192, %s73, [#allocation9], 256, 256, 16
    $region33: #{tpu_custom_call.1} parent=1 // pred_fallthru
      _
    // Predicated region
    $region34: #{tpu_custom_call.1} parent=1 // pred_check
      _
    $region35: #{tpu_custom_call.1} parent=1 // pred_check_branch
      %80 = sbr.rel (0) target = $region37
    $region36: #{tpu_custom_call.1} parent=1 // pred_region
      _
    $region37: #{tpu_custom_call.1} parent=1 // pred_fallthru
      _
    // Predicated region
    $region38: #{tpu_custom_call.1} parent=1 // pred_check
      _
    $region39: #{tpu_custom_call.1} parent=1 // pred_check_branch
      %82 = sbr.rel (0) target = $region41
    $region40: #{tpu_custom_call.1} parent=1 // pred_region
      _
    $region41: #{tpu_custom_call.1} parent=1 // pred_fallthru
      _
    // Predicated region
    $region42: #{tpu_custom_call.1} parent=1 // pred_check
      _
    $region43: #{tpu_custom_call.1} parent=1 // pred_check_branch
      %84 = sbr.rel (0) target = $region45
    $region44: #{tpu_custom_call.1} parent=1 // pred_region
      _
    $region45: #{tpu_custom_call.1} parent=1 // pred_fallthru
      _
    // Predicated region
    $region46: #{tpu_custom_call.1} parent=1 // pred_check
      _
    $region47: #{tpu_custom_call.1} parent=1 // pred_check_branch
      %86 = sbr.rel (0) target = $region49
    $region48: #{tpu_custom_call.1} parent=1 // pred_region
      %88 = dma.done [#allocation4], 512
    $region49: #{tpu_custom_call.1} parent=1 // pred_fallthru
      _
    // Predicated region
    $region50: #{tpu_custom_call.1} parent=1 // pred_check
      _
    $region51: #{tpu_custom_call.1} parent=1 // pred_check_branch
      %90 = sbr.rel (0) target = $region53
    $region52: #{tpu_custom_call.1} parent=1 // pred_region
      %92 = dma.done [#allocation6], 32
    $region53: #{tpu_custom_call.1} parent=1 // pred_fallthru
      _
    // Predicated region
    $region54: #{tpu_custom_call.1} parent=1 // pred_check
      _
    $region55: #{tpu_custom_call.1} parent=1 // pred_check_branch
      %94 = sbr.rel (0) target = $region57
    $region56: #{tpu_custom_call.1} parent=1 // pred_region
      %96 = dma.done [#allocation6], 8192
    $region57: #{tpu_custom_call.1} parent=1 // pred_fallthru
      _
    // Predicated region
    $region58: #{tpu_custom_call.1} parent=1 // pred_check
      _
    $region59: #{tpu_custom_call.1} parent=1 // pred_check_branch
      %98 = sbr.rel (0) target = $region61
    $region60: #{tpu_custom_call.1} parent=1 // pred_region
      %100 = dma.done [#allocation9], 8192
    $region61: #{tpu_custom_call.1} parent=1 // pred_fallthru
      _
    %v101 = vld [vmem:[%s0] sm:$0xff]
    %v102 = vld [vmem:[#allocation3] sm:$0xff]
    %v103 = vld [vmem:[#allocation3 + $0x8] sm:$0xff]
    %v104 = vld [vmem:[#allocation3 + $0x10] sm:$0x7f]
    %v105 = vld [vmem:[#allocation3 + $0x18] sm:$0x7f]
    %v106 = vld [vmem:[%s1] sm:$0xff]
    %v107 = vld [vmem:[%s3] sm:$0xff]
    %109 = vst [vmem:[#allocation1] ss:$2 sm:$0xff] %v107
    %v110 = vld.sshfl [vmem:[#allocation1] sm:$0xff pattern:$0x75316420]
    %v111 = vld.sshfl [vmem:[#allocation1 + $0x8] sm:$0xff pattern:$0x75316420]
    %vm112 = vcmask 31744
    %v114 = vsel %vm112, %v106, 0
    %vm116 = vcmask 1043456
    %v117 = vsel %vm116, %v110, 0
    %v119 = vsel %vm116, %v111, 0
    %121 = vmatpush.msra.mxu0 0.0
    %122 = vmatpush.msra.mxu0 0.0
    %123 = vmatpush.msra.mxu0 0.0
    %124 = vmatpush.msra.mxu0 0.0
    %125 = vmatpush.msra.mxu0 0.0
    %126 = vmatpush.msra.mxu0 0.0
    %127 = vmatpush.msra.mxu0 0.0
    %128 = vmatpush.msra.mxu0 0.0
    %129 = vmatpush.msra.mxu0 0.0
    %130 = vmatpush.msra.mxu0 0.0
    %131 = vmatpush.msra.mxu0 0.0
    %132 = vmatpush.msra.mxu0 0.0
    %133 = vmatpush.msra.mxu0 0.0
    %134 = vmatpush.msra.mxu0 0.0
    %135 = vmatpush.msra.mxu0 0.0
    %136 = vmatpush.msra.mxu0 %v117
    %137 = vmatmul.f32.gmra.mxu0 %v114
    %v138 = vpop.f32.mrf.mxu0
    %v139 = vadd.f32 0.0, %v138
    %140 = vdwg.mxu0
    %141 = vmatpush.msra.mxu0 0.0
    %142 = vmatpush.msra.mxu0 0.0
    %143 = vmatpush.msra.mxu0 0.0
    %144 = vmatpush.msra.mxu0 0.0
    %145 = vmatpush.msra.mxu0 0.0
    %146 = vmatpush.msra.mxu0 0.0
    %147 = vmatpush.msra.mxu0 0.0
    %148 = vmatpush.msra.mxu0 0.0
    %149 = vmatpush.msra.mxu0 0.0
    %150 = vmatpush.msra.mxu0 0.0
    %151 = vmatpush.msra.mxu0 0.0
    %152 = vmatpush.msra.mxu0 0.0
    %153 = vmatpush.msra.mxu0 0.0
    %154 = vmatpush.msra.mxu0 0.0
    %155 = vmatpush.msra.mxu0 0.0
    %156 = vmatpush.msra.mxu0 %v119
    %157 = vmatmul.f32.gmra.mxu0 %v114
    %v158 = vpop.f32.mrf.mxu0
    %v159 = vadd.f32 0.0, %v158
    %160 = vdwg.mxu0
    %vm161 = vcmask 121856
    %v163 = vsel %vm161, %v101, 0
    %vm165 = vcmask 1046528
    %v167 = vsel %vm165, %v104, 0
    %v170 = vsel %vm165, %v105, 0
    %172 = vmatpush.msra.mxu0 0.0
    %173 = vmatpush.msra.mxu0 0.0
    %174 = vmatpush.msra.mxu0 0.0
    %175 = vmatpush.msra.mxu0 0.0
    %176 = vmatpush.msra.mxu0 0.0
    %177 = vmatpush.msra.mxu0 0.0
    %178 = vmatpush.msra.mxu0 0.0
    %179 = vmatpush.msra.mxu0 0.0
    %180 = vmatpush.msra.mxu0 0.0
    %181 = vmatpush.msra.mxu0 0.0
    %182 = vmatpush.msra.mxu0 0.0
    %183 = vmatpush.msra.mxu0 0.0
    %184 = vmatpush.msra.mxu0 0.0
    %185 = vmatpush.msra.mxu0 0.0
    %186 = vmatpush.msra.mxu0 %v167
    %187 = vmatpush.msra.mxu0 %v102
    %188 = vmatmul.f32.gmra.mxu0 %v163
    %v189 = vpop.f32.mrf.mxu0
    %v190 = vadd.f32 %v139, %v189
    %191 = vdwg.mxu0
    %192 = vmatpush.msra.mxu0 0.0
    %193 = vmatpush.msra.mxu0 0.0
    %194 = vmatpush.msra.mxu0 0.0
    %195 = vmatpush.msra.mxu0 0.0
    %196 = vmatpush.msra.mxu0 0.0
    %197 = vmatpush.msra.mxu0 0.0
    %198 = vmatpush.msra.mxu0 0.0
    %199 = vmatpush.msra.mxu0 0.0
    %200 = vmatpush.msra.mxu0 0.0
    %201 = vmatpush.msra.mxu0 0.0
    %202 = vmatpush.msra.mxu0 0.0
    %203 = vmatpush.msra.mxu0 0.0
    %204 = vmatpush.msra.mxu0 0.0
    %205 = vmatpush.msra.mxu0 0.0
    %206 = vmatpush.msra.mxu0 %v170
    %207 = vmatpush.msra.mxu0 %v103
    %208 = vmatmul.f32.gmra.mxu0 %v163
    %v209 = vpop.f32.mrf.mxu0
    %v210 = vadd.f32 %v159, %v209
    %211 = vdwg.mxu0
    %v212 = vld [vmem:[#allocation5] sm:$0x3]
    %v214 = vperm.slane %v212, 0
    %v215 = vperm.slane %v212, 1
    %v218 = vadd.f32 %v190, %v214
    %v219 = vadd.f32 %v210, %v215
    %v220 = vmax.f32 %v218, 0.0
    %v221 = vmax.f32 %v219, 0.0
    %v222 = vld [vmem:[#allocation7] sm:$0xff]
    %v223 = vld [vmem:[#allocation7 + $0x8] sm:$0xff]
    %v224 = vld [vmem:[#allocation7 + $0x10] sm:$0xff]
    %v225 = vld [vmem:[#allocation7 + $0x18] sm:$0xff]
    %v226 = vld [vmem:[#allocation7 + $0x20] sm:$0xff]
    %v227 = vld [vmem:[#allocation7 + $0x28] sm:$0xff]
    %v228 = vld [vmem:[#allocation7 + $0x30] sm:$0xff]
    %v229 = vld [vmem:[#allocation7 + $0x38] sm:$0xff]
    %v230 = vld [vmem:[#allocation7 + $0x40] sm:$0xff]
    %v231 = vld [vmem:[#allocation7 + $0x48] sm:$0xff]
    %v232 = vld [vmem:[#allocation7 + $0x50] sm:$0xff]
    %v233 = vld [vmem:[#allocation7 + $0x58] sm:$0xff]
    %v234 = vld [vmem:[#allocation7 + $0x60] sm:$0xff]
    %v235 = vld [vmem:[#allocation7 + $0x68] sm:$0xff]
    %v236 = vld [vmem:[#allocation7 + $0x70] sm:$0xff]
    %v237 = vld [vmem:[#allocation7 + $0x78] sm:$0xff]
    %v238 = vld [vmem:[#allocation7 + $0x80] sm:$0xff]
    %v239 = vld [vmem:[#allocation7 + $0x88] sm:$0xff]
    %v240 = vld [vmem:[#allocation7 + $0x90] sm:$0xff]
    %v241 = vld [vmem:[#allocation7 + $0x98] sm:$0xff]
    %v242 = vld [vmem:[#allocation7 + $0xa0] sm:$0xff]
    %v243 = vld [vmem:[#allocation7 + $0xa8] sm:$0xff]
    %v244 = vld [vmem:[#allocation7 + $0xb0] sm:$0xff]
    %v245 = vld [vmem:[#allocation7 + $0xb8] sm:$0xff]
    %v246 = vld [vmem:[#allocation7 + $0xc0] sm:$0xff]
    %v247 = vld [vmem:[#allocation7 + $0xc8] sm:$0xff]
    %v248 = vld [vmem:[#allocation7 + $0xd0] sm:$0xff]
    %v249 = vld [vmem:[#allocation7 + $0xd8] sm:$0xff]
    %v250 = vld [vmem:[#allocation7 + $0xe0] sm:$0xff]
    %v251 = vld [vmem:[#allocation7 + $0xe8] sm:$0xff]
    %v252 = vld [vmem:[#allocation7 + $0xf0] sm:$0xff]
    %v253 = vld [vmem:[#allocation7 + $0xf8] sm:$0xff]
    %v254 = vld [vmem:[#allocation7 + $0x100] sm:$0xff]
    %v255 = vld [vmem:[#allocation7 + $0x108] sm:$0xff]
    %v256 = vld [vmem:[#allocation7 + $0x110] sm:$0xff]
    %v257 = vld [vmem:[#allocation7 + $0x118] sm:$0xff]
    %v258 = vld [vmem:[#allocation7 + $0x120] sm:$0xff]
    %v259 = vld [vmem:[#allocation7 + $0x128] sm:$0xff]
    %v260 = vld [vmem:[#allocation7 + $0x130] sm:$0xff]
    %v261 = vld [vmem:[#allocation7 + $0x138] sm:$0xff]
    %v262 = vld [vmem:[#allocation7 + $0x140] sm:$0xff]
    %v263 = vld [vmem:[#allocation7 + $0x148] sm:$0xff]
    %v264 = vld [vmem:[#allocation7 + $0x150] sm:$0xff]
    %v265 = vld [vmem:[#allocation7 + $0x158] sm:$0xff]
    %v266 = vld [vmem:[#allocation7 + $0x160] sm:$0xff]
    %v267 = vld [vmem:[#allocation7 + $0x168] sm:$0xff]
    %v268 = vld [vmem:[#allocation7 + $0x170] sm:$0xff]
    %v269 = vld [vmem:[#allocation7 + $0x178] sm:$0xff]
    %v270 = vld [vmem:[#allocation7 + $0x180] sm:$0xff]
    %v271 = vld [vmem:[#allocation7 + $0x188] sm:$0xff]
    %v272 = vld [vmem:[#allocation7 + $0x190] sm:$0xff]
    %v273 = vld [vmem:[#allocation7 + $0x198] sm:$0xff]
    %v274 = vld [vmem:[#allocation7 + $0x1a0] sm:$0xff]
    %v275 = vld [vmem:[#allocation7 + $0x1a8] sm:$0xff]
    %v276 = vld [vmem:[#allocation7 + $0x1b0] sm:$0xff]
    %v277 = vld [vmem:[#allocation7 + $0x1b8] sm:$0xff]
    %v278 = vld [vmem:[#allocation7 + $0x1c0] sm:$0xff]
    %v279 = vld [vmem:[#allocation7 + $0x1c8] sm:$0xff]
    %v280 = vld [vmem:[#allocation7 + $0x1d0] sm:$0xff]
    %v281 = vld [vmem:[#allocation7 + $0x1d8] sm:$0xff]
    %v282 = vld [vmem:[#allocation7 + $0x1e0] sm:$0xff]
    %v283 = vld [vmem:[#allocation7 + $0x1e8] sm:$0xff]
    %v284 = vld [vmem:[#allocation7 + $0x1f0] sm:$0xff]
    %v285 = vld [vmem:[#allocation7 + $0x1f8] sm:$0xff]
    %v286 = vld [vmem:[%s6] sm:$0x3]
    %v288 = vperm.slane %v286, 0
    %v289 = vperm.slane %v286, 1
    %292 = vmatpush.msra.mxu0 %v252
    %293 = vmatpush.msra.mxu0 %v250
    %294 = vmatpush.msra.mxu0 %v248
    %295 = vmatpush.msra.mxu0 %v246
    %296 = vmatpush.msra.mxu0 %v244
    %297 = vmatpush.msra.mxu0 %v242
    %298 = vmatpush.msra.mxu0 %v240
    %299 = vmatpush.msra.mxu0 %v238
    %300 = vmatpush.msra.mxu0 %v236
    %301 = vmatpush.msra.mxu0 %v234
    %302 = vmatpush.msra.mxu0 %v232
    %303 = vmatpush.msra.mxu0 %v230
    %304 = vmatpush.msra.mxu0 %v228
    %305 = vmatpush.msra.mxu0 %v226
    %306 = vmatpush.msra.mxu0 %v224
    %307 = vmatpush.msra.mxu0 %v222
    %308 = vmatmul.f32.gmra.mxu0 %v220
    %v309 = vpop.f32.mrf.mxu0
    %v310 = vadd.f32 %v288, %v309
    %311 = vdwg.mxu0
    %312 = vmatpush.msra.mxu0 %v284
    %313 = vmatpush.msra.mxu0 %v282
    %314 = vmatpush.msra.mxu0 %v280
    %315 = vmatpush.msra.mxu0 %v278
    %316 = vmatpush.msra.mxu0 %v276
    %317 = vmatpush.msra.mxu0 %v274
    %318 = vmatpush.msra.mxu0 %v272
    %319 = vmatpush.msra.mxu0 %v270
    %320 = vmatpush.msra.mxu0 %v268
    %321 = vmatpush.msra.mxu0 %v266
    %322 = vmatpush.msra.mxu0 %v264
    %323 = vmatpush.msra.mxu0 %v262
    %324 = vmatpush.msra.mxu0 %v260
    %325 = vmatpush.msra.mxu0 %v258
    %326 = vmatpush.msra.mxu0 %v256
    %327 = vmatpush.msra.mxu0 %v254
    %328 = vmatmul.f32.gmra.mxu0 %v221
    %v329 = vpop.f32.mrf.mxu0
    %v330 = vadd.f32 %v310, %v329
    %331 = vdwg.mxu0
    %332 = vmatpush.msra.mxu0 %v253
    %333 = vmatpush.msra.mxu0 %v251
    %334 = vmatpush.msra.mxu0 %v249
    %335 = vmatpush.msra.mxu0 %v247
    %336 = vmatpush.msra.mxu0 %v245
    %337 = vmatpush.msra.mxu0 %v243
    %338 = vmatpush.msra.mxu0 %v241
    %339 = vmatpush.msra.mxu0 %v239
    %340 = vmatpush.msra.mxu0 %v237
    %341 = vmatpush.msra.mxu0 %v235
    %342 = vmatpush.msra.mxu0 %v233
    %343 = vmatpush.msra.mxu0 %v231
    %344 = vmatpush.msra.mxu0 %v229
    %345 = vmatpush.msra.mxu0 %v227
    %346 = vmatpush.msra.mxu0 %v225
    %347 = vmatpush.msra.mxu0 %v223
    %348 = vmatmul.f32.gmra.mxu0 %v220
    %v349 = vpop.f32.mrf.mxu0
    %v350 = vadd.f32 %v289, %v349
    %351 = vdwg.mxu0
    %352 = vmatpush.msra.mxu0 %v285
    %353 = vmatpush.msra.mxu0 %v283
    %354 = vmatpush.msra.mxu0 %v281
    %355 = vmatpush.msra.mxu0 %v279
    %356 = vmatpush.msra.mxu0 %v277
    %357 = vmatpush.msra.mxu0 %v275
    %358 = vmatpush.msra.mxu0 %v273
    %359 = vmatpush.msra.mxu0 %v271
    %360 = vmatpush.msra.mxu0 %v269
    %361 = vmatpush.msra.mxu0 %v267
    %362 = vmatpush.msra.mxu0 %v265
    %363 = vmatpush.msra.mxu0 %v263
    %364 = vmatpush.msra.mxu0 %v261
    %365 = vmatpush.msra.mxu0 %v259
    %366 = vmatpush.msra.mxu0 %v257
    %367 = vmatpush.msra.mxu0 %v255
    %368 = vmatmul.f32.gmra.mxu0 %v221
    %v369 = vpop.f32.mrf.mxu0
    %v370 = vadd.f32 %v350, %v369
    %371 = vdwg.mxu0
    %v372 = vmax.f32 %v330, 0.0
    %v373 = vmax.f32 %v370, 0.0
    %v374 = vld [vmem:[#allocation8] sm:$0xff]
    %v375 = vld [vmem:[#allocation8 + $0x8] sm:$0xff]
    %v376 = vld [vmem:[#allocation8 + $0x10] sm:$0xff]
    %v377 = vld [vmem:[#allocation8 + $0x18] sm:$0xff]
    %v378 = vld [vmem:[#allocation8 + $0x20] sm:$0xff]
    %v379 = vld [vmem:[#allocation8 + $0x28] sm:$0xff]
    %v380 = vld [vmem:[#allocation8 + $0x30] sm:$0xff]
    %v381 = vld [vmem:[#allocation8 + $0x38] sm:$0xff]
    %v382 = vld [vmem:[#allocation8 + $0x40] sm:$0xff]
    %v383 = vld [vmem:[#allocation8 + $0x48] sm:$0xff]
    %v384 = vld [vmem:[#allocation8 + $0x50] sm:$0xff]
    %v385 = vld [vmem:[#allocation8 + $0x58] sm:$0xff]
    %v386 = vld [vmem:[#allocation8 + $0x60] sm:$0xff]
    %v387 = vld [vmem:[#allocation8 + $0x68] sm:$0xff]
    %v388 = vld [vmem:[#allocation8 + $0x70] sm:$0xff]
    %v389 = vld [vmem:[#allocation8 + $0x78] sm:$0xff]
    %v390 = vld [vmem:[#allocation8 + $0x80] sm:$0xff]
    %v391 = vld [vmem:[#allocation8 + $0x88] sm:$0xff]
    %v392 = vld [vmem:[#allocation8 + $0x90] sm:$0xff]
    %v393 = vld [vmem:[#allocation8 + $0x98] sm:$0xff]
    %v394 = vld [vmem:[#allocation8 + $0xa0] sm:$0xff]
    %v395 = vld [vmem:[#allocation8 + $0xa8] sm:$0xff]
    %v396 = vld [vmem:[#allocation8 + $0xb0] sm:$0xff]
    %v397 = vld [vmem:[#allocation8 + $0xb8] sm:$0xff]
    %v398 = vld [vmem:[#allocation8 + $0xc0] sm:$0xff]
    %v399 = vld [vmem:[#allocation8 + $0xc8] sm:$0xff]
    %v400 = vld [vmem:[#allocation8 + $0xd0] sm:$0xff]
    %v401 = vld [vmem:[#allocation8 + $0xd8] sm:$0xff]
    %v402 = vld [vmem:[#allocation8 + $0xe0] sm:$0xff]
    %v403 = vld [vmem:[#allocation8 + $0xe8] sm:$0xff]
    %v404 = vld [vmem:[#allocation8 + $0xf0] sm:$0xff]
    %v405 = vld [vmem:[#allocation8 + $0xf8] sm:$0xff]
    %v406 = vld [vmem:[#allocation8 + $0x100] sm:$0xff]
    %v407 = vld [vmem:[#allocation8 + $0x108] sm:$0xff]
    %v408 = vld [vmem:[#allocation8 + $0x110] sm:$0xff]
    %v409 = vld [vmem:[#allocation8 + $0x118] sm:$0xff]
    %v410 = vld [vmem:[#allocation8 + $0x120] sm:$0xff]
    %v411 = vld [vmem:[#allocation8 + $0x128] sm:$0xff]
    %v412 = vld [vmem:[#allocation8 + $0x130] sm:$0xff]
    %v413 = vld [vmem:[#allocation8 + $0x138] sm:$0xff]
    %v414 = vld [vmem:[#allocation8 + $0x140] sm:$0xff]
    %v415 = vld [vmem:[#allocation8 + $0x148] sm:$0xff]
    %v416 = vld [vmem:[#allocation8 + $0x150] sm:$0xff]
    %v417 = vld [vmem:[#allocation8 + $0x158] sm:$0xff]
    %v418 = vld [vmem:[#allocation8 + $0x160] sm:$0xff]
    %v419 = vld [vmem:[#allocation8 + $0x168] sm:$0xff]
    %v420 = vld [vmem:[#allocation8 + $0x170] sm:$0xff]
    %v421 = vld [vmem:[#allocation8 + $0x178] sm:$0xff]
    %v422 = vld [vmem:[#allocation8 + $0x180] sm:$0xff]
    %v423 = vld [vmem:[#allocation8 + $0x188] sm:$0xff]
    %v424 = vld [vmem:[#allocation8 + $0x190] sm:$0xff]
    %v425 = vld [vmem:[#allocation8 + $0x198] sm:$0xff]
    %v426 = vld [vmem:[#allocation8 + $0x1a0] sm:$0xff]
    %v427 = vld [vmem:[#allocation8 + $0x1a8] sm:$0xff]
    %v428 = vld [vmem:[#allocation8 + $0x1b0] sm:$0xff]
    %v429 = vld [vmem:[#allocation8 + $0x1b8] sm:$0xff]
    %v430 = vld [vmem:[#allocation8 + $0x1c0] sm:$0xff]
    %v431 = vld [vmem:[#allocation8 + $0x1c8] sm:$0xff]
    %v432 = vld [vmem:[#allocation8 + $0x1d0] sm:$0xff]
    %v433 = vld [vmem:[#allocation8 + $0x1d8] sm:$0xff]
    %v434 = vld [vmem:[#allocation8 + $0x1e0] sm:$0xff]
    %v435 = vld [vmem:[#allocation8 + $0x1e8] sm:$0xff]
    %v436 = vld [vmem:[#allocation8 + $0x1f0] sm:$0xff]
    %v437 = vld [vmem:[#allocation8 + $0x1f8] sm:$0xff]
    %v438 = vld [vmem:[%s8] sm:$0x3]
    %v440 = vperm.slane %v438, 0
    %v441 = vperm.slane %v438, 1
    %444 = vmatpush.msra.mxu0 %v404
    %445 = vmatpush.msra.mxu0 %v402
    %446 = vmatpush.msra.mxu0 %v400
    %447 = vmatpush.msra.mxu0 %v398
    %448 = vmatpush.msra.mxu0 %v396
    %449 = vmatpush.msra.mxu0 %v394
    %450 = vmatpush.msra.mxu0 %v392
    %451 = vmatpush.msra.mxu0 %v390
    %452 = vmatpush.msra.mxu0 %v388
    %453 = vmatpush.msra.mxu0 %v386
    %454 = vmatpush.msra.mxu0 %v384
    %455 = vmatpush.msra.mxu0 %v382
    %456 = vmatpush.msra.mxu0 %v380
    %457 = vmatpush.msra.mxu0 %v378
    %458 = vmatpush.msra.mxu0 %v376
    %459 = vmatpush.msra.mxu0 %v374
    %460 = vmatmul.f32.gmra.mxu0 %v372
    %v461 = vpop.f32.mrf.mxu0
    %v462 = vadd.f32 %v440, %v461
    %463 = vdwg.mxu0
    %464 = vmatpush.msra.mxu0 %v436
    %465 = vmatpush.msra.mxu0 %v434
    %466 = vmatpush.msra.mxu0 %v432
    %467 = vmatpush.msra.mxu0 %v430
    %468 = vmatpush.msra.mxu0 %v428
    %469 = vmatpush.msra.mxu0 %v426
    %470 = vmatpush.msra.mxu0 %v424
    %471 = vmatpush.msra.mxu0 %v422
    %472 = vmatpush.msra.mxu0 %v420
    %473 = vmatpush.msra.mxu0 %v418
    %474 = vmatpush.msra.mxu0 %v416
    %475 = vmatpush.msra.mxu0 %v414
    %476 = vmatpush.msra.mxu0 %v412
    %477 = vmatpush.msra.mxu0 %v410
    %478 = vmatpush.msra.mxu0 %v408
    %479 = vmatpush.msra.mxu0 %v406
    %480 = vmatmul.f32.gmra.mxu0 %v373
    %v481 = vpop.f32.mrf.mxu0
    %v482 = vadd.f32 %v462, %v481
    %483 = vdwg.mxu0
    %484 = vmatpush.msra.mxu0 %v405
    %485 = vmatpush.msra.mxu0 %v403
    %486 = vmatpush.msra.mxu0 %v401
    %487 = vmatpush.msra.mxu0 %v399
    %488 = vmatpush.msra.mxu0 %v397
    %489 = vmatpush.msra.mxu0 %v395
    %490 = vmatpush.msra.mxu0 %v393
    %491 = vmatpush.msra.mxu0 %v391
    %492 = vmatpush.msra.mxu0 %v389
    %493 = vmatpush.msra.mxu0 %v387
    %494 = vmatpush.msra.mxu0 %v385
    %495 = vmatpush.msra.mxu0 %v383
    %496 = vmatpush.msra.mxu0 %v381
    %497 = vmatpush.msra.mxu0 %v379
    %498 = vmatpush.msra.mxu0 %v377
    %499 = vmatpush.msra.mxu0 %v375
    %500 = vmatmul.f32.gmra.mxu0 %v372
    %v501 = vpop.f32.mrf.mxu0
    %v502 = vadd.f32 %v441, %v501
    %503 = vdwg.mxu0
    %504 = vmatpush.msra.mxu0 %v437
    %505 = vmatpush.msra.mxu0 %v435
    %506 = vmatpush.msra.mxu0 %v433
    %507 = vmatpush.msra.mxu0 %v431
    %508 = vmatpush.msra.mxu0 %v429
    %509 = vmatpush.msra.mxu0 %v427
    %510 = vmatpush.msra.mxu0 %v425
    %511 = vmatpush.msra.mxu0 %v423
    %512 = vmatpush.msra.mxu0 %v421
    %513 = vmatpush.msra.mxu0 %v419
    %514 = vmatpush.msra.mxu0 %v417
    %515 = vmatpush.msra.mxu0 %v415
    %516 = vmatpush.msra.mxu0 %v413
    %517 = vmatpush.msra.mxu0 %v411
    %518 = vmatpush.msra.mxu0 %v409
    %519 = vmatpush.msra.mxu0 %v407
    %520 = vmatmul.f32.gmra.mxu0 %v373
    %v521 = vpop.f32.mrf.mxu0
    %v522 = vadd.f32 %v502, %v521
    %523 = vdwg.mxu0
    %v524 = vmax.f32 %v482, 0.0
    %v525 = vmax.f32 %v522, 0.0
    %v526 = vld [vmem:[%s9] sm:$0x3]
    %v528 = vperm.slane %v526, 0
    %v529 = vperm.slane %v526, 1
    %v532 = vmul.f32 %v524, %v528
    %v533 = vmul.f32 %v525, %v529
    %v534 = vadd.f32 %v532, %v533
    %535 = vadd.xlane.f32.xlu0 %v534
    %v536 = vpop.xlane.xlu0 %535
    %v537 = vld [vmem:[#allocation2] sm:$0x1]
    %v539 = vperm.slane %v537, 0
    %v541 = vadd.f32 %v536, %v539
    %vm542 = vcmask 7168
    %543 = vst.msk [vmem:[%s11] sm:$0xff] %vm542, %v541
    // Predicated region
    $region62: #{tpu_custom_call.1} parent=1 // pred_check
      _
    $region63: #{tpu_custom_call.1} parent=1 // pred_check_branch
      %545 = sbr.rel (0) target = $region65
    $region64: #{tpu_custom_call.1} parent=1 // pred_region
      _
    $region65: #{tpu_custom_call.1} parent=1 // pred_fallthru
      _
    // Predicated region
    $region66: #{tpu_custom_call.1} parent=1 // pred_check
      _
    $region67: #{tpu_custom_call.1} parent=1 // pred_check_branch
      %547 = sbr.rel (0) target = $region69
    $region68: #{tpu_custom_call.1} parent=1 // pred_region
      _
    $region69: #{tpu_custom_call.1} parent=1 // pred_fallthru
      _
    %548 = vsyncpa [#allocation4], 1
    %549 = vsyncpa [#allocation6], 1
    %550 = vsyncpa [#allocation9], 1

</llo_original>
